<compile_context>
chip_gen: v5e
topology: v5e:2x2
jax: 0.10.0
libtpu: 0.0.40
codegen_flags: <defaults>
</compile_context>

<pallas_src>
import functools

import numpy as np
import jax
import jax.numpy as jnp
from jax import lax
from jax.experimental import pallas as pl
from jax.experimental.pallas import tpu as pltpu


def _largest_divisor(n, cap, aligns=(256, 128, 8, 1)):
    """Largest divisor of n that is <= cap, preferring MXU/lane friendly alignments."""
    if n <= cap:
        return n
    for align in aligns:
        d = cap - cap % align
        while d >= align:
            if n % d == 0:
                return d
            d -= align
    return 1


def _tile_start(t, tile):
    if isinstance(t, int):          # static fast path (single tile)
        return t * tile
    return pl.multiple_of(t * tile, tile)


def _fused_loss_kernel(scal_ref, feat_ref, labc_ref, labr_ref, x1_ref, x2_ref, out_ref,
                       *, margin, row_tile, np_tile, ng_tile):
    bt, _, N = feat_ref.shape
    Np = x1_ref.shape[2]
    Ng = x2_ref.shape[2]

    # scalars live in SMEM (scalar prefetch); embed into small vectors, convert i32->u32 there.
    thr = (jnp.zeros((1, 1, 1), jnp.int32) + scal_ref[0]).astype(jnp.uint32)      # threshold
    seed_v = (jnp.zeros((bt, 1, 1), jnp.int32) + scal_ref[1]).astype(jnp.uint32)  # base seed

    # ---------------- contrastive cosine pair loss (row-tiled over query points) -----------
    f = feat_ref[...]                                                  # (bt, C, N) f32
    inv = lax.rsqrt(jnp.maximum(jnp.sum(f * f, axis=1, keepdims=True), 1e-24))
    keys = (f * inv).astype(jnp.bfloat16)                              # normalized keys (bf16 in, f32 acc)

    lab_row = labr_ref[...]                                            # (bt, 1, N) f32

    pid = pl.program_id(0)
    b_idx = (lax.broadcasted_iota(jnp.int32, (bt, 1, 1), 0) + pid * bt).astype(jnp.uint32)
    bseed = seed_v + b_idx * jnp.uint32(0x9E3779B1)                    # (bt,1,1) per-batch seed

    col = lax.broadcasted_iota(jnp.int32, (1, 1, N), 2)                # (1,1,N)
    hc = col.astype(jnp.uint32) * jnp.uint32(0x85EBCA77)               # O(N) column hash
    hc = (hc ^ (hc >> 13)) * jnp.uint32(0xC2B2AE3D)

    def cos_tile(t, acc):
        r0 = _tile_start(t, row_tile)
        q = feat_ref[:, :, pl.ds(r0, row_tile)]                        # (bt, C, TR)
        qi = lax.rsqrt(jnp.maximum(jnp.sum(q * q, axis=1, keepdims=True), 1e-24))
        qb = (q * qi).astype(jnp.bfloat16)
        sim = lax.dot_general(qb, keys, (((1,), (1,)), ((0,), (0,))),
                              preferred_element_type=jnp.float32)      # (bt, TR, N)

        lab_c = labc_ref[:, pl.ds(r0, row_tile), :]                    # (bt, TR, 1)
        pos = lab_c == lab_row                                         # (bt, TR, N)

        row = lax.broadcasted_iota(jnp.int32, (1, row_tile, 1), 1) + r0
        offdiag = row != col                                           # (1, TR, N)

        hr = bseed + row.astype(jnp.uint32) * jnp.uint32(0x9E3779B1)   # O(TR) row hash
        hr = (hr ^ (hr >> 16)) * jnp.uint32(0x7FEB352D)
        hr = hr ^ (hr >> 15)
        samp = ((hr ^ hc) * jnp.uint32(0x846CA68B)) > thr              # ~3 VALU ops / element

        hinge = jnp.maximum(sim - margin, 0.0)
        inner = jnp.where(pos, 1.0 - sim, jnp.where(samp, hinge, 0.0))
        contrib = jnp.where(offdiag, inner, 0.0)
        # sublane-direction bulk reduce first (VPU), one final lane reduce on a (1,N) row
        part = jnp.sum(jnp.sum(contrib, axis=1, keepdims=True), axis=2, keepdims=True)
        return acc + part

    n_rt = N // row_tile
    cos0 = jnp.zeros((bt, 1, 1), jnp.float32)
    cos = cos_tile(0, cos0) if n_rt == 1 else lax.fori_loop(0, n_rt, cos_tile, cos0)

    # ---------------- Chamfer loss (bias folded into augmented coords; sublane-only mins) ---
    x1 = x1_ref[...]                                                   # (bt, 8, Np)  [-2p,|p|^2,1,0..]
    x2 = x2_ref[...]                                                   # (bt, 8, Ng)  [ g, 1,|g|^2,0..]

    def d1_tile(t, run_min):                                           # min over predicted points i
        r0 = _tile_start(t, np_tile)
        x1t = x1_ref[:, :, pl.ds(r0, np_tile)]
        dist = lax.dot_general(x1t, x2, (((1,), (1,)), ((0,), (0,))),
                               preferred_element_type=jnp.float32)     # (bt, TP, Ng)
        return jnp.minimum(run_min, jnp.min(dist, axis=1, keepdims=True))

    def d2_tile(t, run_min):                                           # min over gt points j
        r0 = _tile_start(t, ng_tile)
        x2t = x2_ref[:, :, pl.ds(r0, ng_tile)]
        distT = lax.dot_general(x2t, x1, (((1,), (1,)), ((0,), (0,))),
                                preferred_element_type=jnp.float32)    # (bt, TG, Np)
        return jnp.minimum(run_min, jnp.min(distT, axis=1, keepdims=True))

    n1 = Np // np_tile
    init1 = jnp.full((bt, 1, Ng), jnp.inf, jnp.float32)
    m1 = d1_tile(0, init1) if n1 == 1 else lax.fori_loop(0, n1, d1_tile, init1)
    d1 = jnp.sum(m1, axis=2, keepdims=True)                            # sum_j min_i |p_i - g_j|^2

    n2 = Ng // ng_tile
    init2 = jnp.full((bt, 1, Np), jnp.inf, jnp.float32)
    m2 = d2_tile(0, init2) if n2 == 1 else lax.fori_loop(0, n2, d2_tile, init2)
    d2 = jnp.sum(m2, axis=2, keepdims=True)                            # sum_i min_j |p_i - g_j|^2

    # ---------------- single lane-dense packed output: lanes 0/1/2 = cos / d1 / d2 ----------
    lane = lax.broadcasted_iota(jnp.int32, (bt, 1, 128), 2)
    out_ref[...] = jnp.where(lane == 0, cos,
                             jnp.where(lane == 1, d1,
                                       jnp.where(lane == 2, d2, 0.0)))


def get_rec_selfsup_loss(feat, target, pts, gtpts, *, num_classes=50, margin=0.5,
                         lcont=0.0, lrec=1.0, seed=0, batch_block=None,
                         row_tile_cap=256, chamfer_tile_cap=512):
    feat = jnp.asarray(feat, jnp.float32)       # (B, C, N)
    target = jnp.asarray(target, jnp.int32)     # (B, N)
    pts = jnp.asarray(pts, jnp.float32)         # (B, Np, D)
    gtpts = jnp.asarray(gtpts, jnp.float32)     # (B, D, Ng)

    B, C, N = feat.shape
    Np, D = pts.shape[1], pts.shape[2]
    Ng = gtpts.shape[2]
    assert gtpts.shape[1] == D
    DP = 8                                      # pad coord axis to one f32 sublane tile

    # Perf feedback: default bt=1 -> bounded per-step live set, grid of B steps.
    bt = 1 if batch_block is None else int(batch_block)
    assert B % bt == 0, (B, bt)
    grid = (B // bt,)

    row_tile = _largest_divisor(N, row_tile_cap)
    np_tile = _largest_divisor(Np, chamfer_tile_cap)
    ng_tile = _largest_divisor(Ng, chamfer_tile_cap)

    # ---- tiny O(B*N) wrapper glue (jit-safe, no host syncs) ----
    cls = jnp.arange(num_classes, dtype=jnp.int32)
    counts = jnp.sum((target[:, :, None] == cls[None, None, :]).astype(jnp.float32), axis=1)
    pos_fraction = jnp.mean(jnp.sum(counts * counts, axis=1)) / float(N * N)
    thr_u = (jnp.clip(1.0 - pos_fraction, 0.0, 0.99999994) * 4294967296.0).astype(jnp.uint32)
    seed_u = jnp.uint32(seed & 0xFFFFFFFF) * jnp.uint32(0x9E3779B1)
    scalars = lax.bitcast_convert_type(jnp.stack([thr_u, seed_u]), jnp.int32)   # (2,) -> SMEM

    labf = target.astype(jnp.float32)
    lab_col = labf.reshape(B, N, 1)
    lab_row = labf.reshape(B, 1, N)

    # Chamfer bias folded into the padded coordinate sublanes (lane-dense layouts):
    pts_t = jnp.transpose(pts, (0, 2, 1))                                       # (B, D, Np)
    p_sq = jnp.sum(pts_t * pts_t, axis=1, keepdims=True)                        # (B, 1, Np)
    x1_aug = jnp.concatenate(
        [-2.0 * pts_t, p_sq, jnp.ones_like(p_sq),
         jnp.zeros((B, DP - D - 2, Np), jnp.float32)], axis=1)                  # (B, 8, Np)
    g_sq = jnp.sum(gtpts * gtpts, axis=1, keepdims=True)                        # (B, 1, Ng)
    x2_aug = jnp.concatenate(
        [gtpts, jnp.ones_like(g_sq), g_sq,
         jnp.zeros((B, DP - D - 2, Ng), jnp.float32)], axis=1)                  # (B, 8, Ng)

    kernel = functools.partial(_fused_loss_kernel, margin=float(margin),
                               row_tile=row_tile, np_tile=np_tile, ng_tile=ng_tile)

    parts = pl.pallas_call(
        kernel,
        out_shape=jax.ShapeDtypeStruct((B, 1, 128), jnp.float32),
        grid_spec=pltpu.PrefetchScalarGridSpec(
            num_scalar_prefetch=1,
            grid=grid,
            in_specs=[
                pl.BlockSpec((bt, C, N), lambda b, s: (b, 0, 0)),    # features
                pl.BlockSpec((bt, N, 1), lambda b, s: (b, 0, 0)),    # labels, column layout
                pl.BlockSpec((bt, 1, N), lambda b, s: (b, 0, 0)),    # labels, row layout
                pl.BlockSpec((bt, DP, Np), lambda b, s: (b, 0, 0)),  # augmented predicted points
                pl.BlockSpec((bt, DP, Ng), lambda b, s: (b, 0, 0)),  # augmented gt points
            ],
            out_specs=pl.BlockSpec((bt, 1, 128), lambda b, s: (b, 0, 0)),
        ),
        compiler_params=pltpu.CompilerParams(
            dimension_semantics=("parallel",),
            vmem_limit_bytes=32 * 1024 * 1024),
    )(scalars, feat, lab_col, lab_row, x1_aug, x2_aug)

    cos_sum = jnp.sum(parts[:, 0, 0])
    d1_sum = jnp.sum(parts[:, 0, 1])
    d2_sum = jnp.sum(parts[:, 0, 2])

    total_loss = 0.5 * cos_sum / float(B * N * N)          # 0.5 * cosine_loss.mean()
    rec_loss = d1_sum / float(B * Ng) + d2_sum / float(B * Np)
    # TODO(synk): torch.cuda.FloatTensor().uniform_() RNG stream is not reproducible on TPU; the
    # in-kernel counter-hash PRNG gives the same sampling distribution but a different stream.
    # TODO(synk): pass precision=jax.lax.Precision.HIGHEST on the Chamfer dot_generals if bit-level
    # parity with the torch f32 reference is required (cheap at K=8).
    return lcont * total_loss + lrec * rec_loss


if __name__ == "__main__":
    key = jax.random.PRNGKey(0)
    k1, k2, k3, k4 = jax.random.split(key, 4)
    B, C, N = 2, 32, 16
    Np, Ng = 16, 24
    feat = jax.random.normal(k1, (B, C, N), jnp.float32)
    target = jax.random.randint(k2, (B, N), 0, 4, dtype=jnp.int32)
    pts = jax.random.normal(k3, (B, Np, 3), jnp.float32)
    gtpts = jax.random.normal(k4, (B, 3, Ng), jnp.float32)

    # Fully jittable (no data-dependent host sync in the wrapper).
    loss_fn = jax.jit(lambda f, t, p, g: get_rec_selfsup_loss(f, t, p, g, num_classes=4))
    loss = loss_fn(feat, target, pts, gtpts)    # defaults: margin=0.5, lcont=0.0, lrec=1.0
    jax.block_until_ready(loss)

    # Deterministic check: with lcont=0.0 only the Chamfer part contributes.
    gt = jnp.transpose(gtpts, (0, 2, 1))
    d = (jnp.sum(gt ** 2, -1)[:, :, None] + jnp.sum(pts ** 2, -1)[:, None, :]
         - 2.0 * jnp.einsum('bmd,bnd->bmn', gt, pts))             # (B, Ng, Np) == torch's d
    ref = jnp.mean(jnp.min(d, axis=2)) + jnp.mean(jnp.min(d, axis=1))
    # loose-ish tolerance to absorb TPU default f32 matmul precision in both computations
    assert np.allclose(np.asarray(loss), np.asarray(ref), rtol=1e-2, atol=1e-2), (loss, ref)

    # exercise the contrastive branch once (lcont > 0) to make sure it runs end to end
    loss2 = get_rec_selfsup_loss(feat, target, pts, gtpts, num_classes=4,
                                 lcont=1.0, lrec=1.0, seed=3)
    jax.block_until_ready(loss2)
    assert np.isfinite(float(loss2))

    print("KERNEL_OK")
</pallas_src>

<mosaic_0001>
module attributes {stable_mosaic.version = 11 : i64} {
  func.func @_fused_loss_kernel(%arg0: i32, %arg1: memref<2xi32, #tpu.memory_space<smem>>, %arg2: memref<1x32x16xf32, #tpu.memory_space<vmem>>, %arg3: memref<1x16x1xf32, #tpu.memory_space<vmem>>, %arg4: memref<1x1x16xf32, #tpu.memory_space<vmem>>, %arg5: memref<1x8x16xf32, #tpu.memory_space<vmem>>, %arg6: memref<1x8x24xf32, #tpu.memory_space<vmem>>, %arg7: memref<1x1x128xf32, #tpu.memory_space<vmem>>) attributes {dimension_semantics = [#tpu.dimension_semantics<parallel>], iteration_bounds = array<i64: 2>, scalar_prefetch = 1 : i64, scratch_operands = 0 : i64, tpu.core_type = #tpu.core_type<tc>, window_params = [{transform_indices = @transform_0, window_bounds = array<i64: 1, 32, 16>}, {transform_indices = @transform_1, window_bounds = array<i64: 1, 16, 1>}, {transform_indices = @transform_2, window_bounds = array<i64: 1, 1, 16>}, {transform_indices = @transform_3, window_bounds = array<i64: 1, 8, 16>}, {transform_indices = @transform_4, window_bounds = array<i64: 1, 8, 24>}, {transform_indices = @transform_5, window_bounds = array<i64: 1, 1, 128>}]} {
    %c0_i32 = arith.constant 0 : i32
    %0 = vector.broadcast %c0_i32 : i32 to vector<1x1x1xi32>
    %c0 = arith.constant 0 : index
    %1 = memref.load %arg1[%c0] : memref<2xi32, #tpu.memory_space<smem>>
    %2 = vector.broadcast %1 : i32 to vector<1x1x1xi32>
    %3 = arith.addi %0, %2 : vector<1x1x1xi32>
    %c0_i32_0 = arith.constant 0 : i32
    %4 = vector.broadcast %c0_i32_0 : i32 to vector<1x1x1xi32>
    %c1 = arith.constant 1 : index
    %5 = memref.load %arg1[%c1] : memref<2xi32, #tpu.memory_space<smem>>
    %6 = vector.broadcast %5 : i32 to vector<1x1x1xi32>
    %7 = arith.addi %4, %6 : vector<1x1x1xi32>
    %c0_1 = arith.constant 0 : index
    %c0_2 = arith.constant 0 : index
    %c0_3 = arith.constant 0 : index
    %8 = vector.load %arg2[%c0_1, %c0_2, %c0_3] : memref<1x32x16xf32, #tpu.memory_space<vmem>>, vector<1x32x16xf32>
    %9 = arith.mulf %8, %8 : vector<1x32x16xf32>
    %cst = arith.constant dense<0.000000e+00> : vector<1x16xf32>
    %10 = vector.multi_reduction <add>, %9, %cst [1] : vector<1x32x16xf32> to vector<1x16xf32>
    %11 = vector.shape_cast %10 : vector<1x16xf32> to vector<1x1x16xf32>
    %cst_4 = arith.constant 1.000000e-24 : f32
    %12 = vector.broadcast %cst_4 : f32 to vector<1x1x16xf32>
    %13 = arith.maximumf %11, %12 : vector<1x1x16xf32>
    %14 = math.rsqrt %13 : vector<1x1x16xf32>
    %15 = vector.broadcast %14 : vector<1x1x16xf32> to vector<1x32x16xf32>
    %16 = arith.mulf %8, %15 : vector<1x32x16xf32>
    %17 = arith.truncf %16 : vector<1x32x16xf32> to vector<1x32x16xbf16>
    %c0_5 = arith.constant 0 : index
    %c0_6 = arith.constant 0 : index
    %c0_7 = arith.constant 0 : index
    %18 = vector.load %arg4[%c0_5, %c0_6, %c0_7] : memref<1x1x16xf32, #tpu.memory_space<vmem>>, vector<1x1x16xf32>
    %19 = tpu.iota {dimensions = array<i32: 0>} : vector<1x1x1xi32>
    %c1_i32 = arith.constant 1 : i32
    %20 = arith.muli %arg0, %c1_i32 : i32
    %21 = vector.broadcast %20 : i32 to vector<1x1x1xi32>
    %22 = arith.addi %19, %21 : vector<1x1x1xi32>
    %c-1640531535_i32 = arith.constant -1640531535 : i32
    %23 = vector.broadcast %c-1640531535_i32 : i32 to vector<1x1x1xi32>
    %24 = arith.muli %22, %23 : vector<1x1x1xi32>
    %25 = arith.addi %7, %24 : vector<1x1x1xi32>
    %26 = tpu.iota {dimensions = array<i32: 2>} : vector<1x1x16xi32>
    %c-2048144777_i32 = arith.constant -2048144777 : i32
    %27 = vector.broadcast %c-2048144777_i32 : i32 to vector<1x1x16xi32>
    %28 = arith.muli %26, %27 : vector<1x1x16xi32>
    %c13_i32 = arith.constant 13 : i32
    %29 = vector.broadcast %c13_i32 : i32 to vector<1x1x16xi32>
    %30 = arith.shrui %28, %29 : vector<1x1x16xi32>
    %31 = arith.xori %28, %30 : vector<1x1x16xi32>
    %c-1028477379_i32 = arith.constant -1028477379 : i32
    %32 = vector.broadcast %c-1028477379_i32 : i32 to vector<1x1x16xi32>
    %33 = arith.muli %31, %32 : vector<1x1x16xi32>
    %cst_8 = arith.constant 0.000000e+00 : f32
    %34 = vector.broadcast %cst_8 : f32 to vector<1x1x1xf32>
    %c0_9 = arith.constant 0 : index
    %c0_10 = arith.constant 0 : index
    %c0_11 = arith.constant 0 : index
    %35 = vector.load %arg2[%c0_9, %c0_10, %c0_11] : memref<1x32x16xf32, #tpu.memory_space<vmem>>, vector<1x32x16xf32>
    %36 = arith.mulf %35, %35 : vector<1x32x16xf32>
    %cst_12 = arith.constant dense<0.000000e+00> : vector<1x16xf32>
    %37 = vector.multi_reduction <add>, %36, %cst_12 [1] : vector<1x32x16xf32> to vector<1x16xf32>
    %38 = vector.shape_cast %37 : vector<1x16xf32> to vector<1x1x16xf32>
    %cst_13 = arith.constant 1.000000e-24 : f32
    %39 = vector.broadcast %cst_13 : f32 to vector<1x1x16xf32>
    %40 = arith.maximumf %38, %39 : vector<1x1x16xf32>
    %41 = math.rsqrt %40 : vector<1x1x16xf32>
    %42 = vector.broadcast %41 : vector<1x1x16xf32> to vector<1x32x16xf32>
    %43 = arith.mulf %35, %42 : vector<1x32x16xf32>
    %44 = arith.truncf %43 : vector<1x32x16xf32> to vector<1x32x16xbf16>
    %cst_14 = arith.constant dense<0.000000e+00> : vector<1x16x16xf32>
    %45 = tpu.matmul %44, %17, %cst_14 {dimension_numbers = #tpu.dot_dimension_numbers<[1], [1], [2], [2], [0, 0, 0, 2, 1, 2], [0], [0]>} : vector<1x32x16xbf16>, vector<1x32x16xbf16>, vector<1x16x16xf32> -> vector<1x16x16xf32>
    %c0_15 = arith.constant 0 : index
    %c0_16 = arith.constant 0 : index
    %c0_17 = arith.constant 0 : index
    %46 = vector.load %arg3[%c0_15, %c0_16, %c0_17] : memref<1x16x1xf32, #tpu.memory_space<vmem>>, vector<1x16x1xf32>
    %47 = vector.broadcast %46 : vector<1x16x1xf32> to vector<1x16x16xf32>
    %48 = vector.broadcast %18 : vector<1x1x16xf32> to vector<1x16x16xf32>
    %49 = arith.cmpf oeq, %47, %48 : vector<1x16x16xf32>
    %50 = tpu.iota {dimensions = array<i32: 1>} : vector<1x16x1xi32>
    %c0_i32_18 = arith.constant 0 : i32
    %51 = vector.broadcast %c0_i32_18 : i32 to vector<1x16x1xi32>
    %52 = arith.addi %50, %51 : vector<1x16x1xi32>
    %53 = vector.broadcast %52 : vector<1x16x1xi32> to vector<1x16x16xi32>
    %54 = vector.broadcast %26 : vector<1x1x16xi32> to vector<1x16x16xi32>
    %55 = arith.cmpi ne, %53, %54 : vector<1x16x16xi32>
    %c-1640531535_i32_19 = arith.constant -1640531535 : i32
    %56 = vector.broadcast %c-1640531535_i32_19 : i32 to vector<1x16x1xi32>
    %57 = arith.muli %52, %56 : vector<1x16x1xi32>
    %58 = vector.broadcast %25 : vector<1x1x1xi32> to vector<1x16x1xi32>
    %59 = arith.addi %58, %57 : vector<1x16x1xi32>
    %c16_i32 = arith.constant 16 : i32
    %60 = vector.broadcast %c16_i32 : i32 to vector<1x16x1xi32>
    %61 = arith.shrui %59, %60 : vector<1x16x1xi32>
    %62 = arith.xori %59, %61 : vector<1x16x1xi32>
    %c2146121005_i32 = arith.constant 2146121005 : i32
    %63 = vector.broadcast %c2146121005_i32 : i32 to vector<1x16x1xi32>
    %64 = arith.muli %62, %63 : vector<1x16x1xi32>
    %c15_i32 = arith.constant 15 : i32
    %65 = vector.broadcast %c15_i32 : i32 to vector<1x16x1xi32>
    %66 = arith.shrui %64, %65 : vector<1x16x1xi32>
    %67 = arith.xori %64, %66 : vector<1x16x1xi32>
    %68 = vector.broadcast %67 : vector<1x16x1xi32> to vector<1x16x16xi32>
    %69 = vector.broadcast %33 : vector<1x1x16xi32> to vector<1x16x16xi32>
    %70 = arith.xori %68, %69 : vector<1x16x16xi32>
    %c-2073254261_i32 = arith.constant -2073254261 : i32
    %71 = vector.broadcast %c-2073254261_i32 : i32 to vector<1x16x16xi32>
    %72 = arith.muli %70, %71 : vector<1x16x16xi32>
    %73 = vector.broadcast %3 : vector<1x1x1xi32> to vector<1x16x16xi32>
    %74 = arith.cmpi ugt, %72, %73 : vector<1x16x16xi32>
    %cst_20 = arith.constant 5.000000e-01 : f32
    %75 = vector.broadcast %cst_20 : f32 to vector<1x16x16xf32>
    %76 = arith.subf %45, %75 : vector<1x16x16xf32>
    %cst_21 = arith.constant 0.000000e+00 : f32
    %77 = vector.broadcast %cst_21 : f32 to vector<1x16x16xf32>
    %78 = arith.maximumf %76, %77 : vector<1x16x16xf32>
    %cst_22 = arith.constant 1.000000e+00 : f32
    %79 = vector.broadcast %cst_22 : f32 to vector<1x16x16xf32>
    %80 = arith.subf %79, %45 : vector<1x16x16xf32>
    %cst_23 = arith.constant 0.000000e+00 : f32
    %81 = vector.broadcast %cst_23 : f32 to vector<1x16x16xf32>
    %82 = arith.select %74, %78, %81 : vector<1x16x16xi1>, vector<1x16x16xf32>
    %83 = arith.select %49, %80, %82 : vector<1x16x16xi1>, vector<1x16x16xf32>
    %cst_24 = arith.constant 0.000000e+00 : f32
    %84 = vector.broadcast %cst_24 : f32 to vector<1x16x16xf32>
    %85 = arith.select %55, %83, %84 : vector<1x16x16xi1>, vector<1x16x16xf32>
    %cst_25 = arith.constant dense<0.000000e+00> : vector<1x16xf32>
    %86 = vector.multi_reduction <add>, %85, %cst_25 [1] : vector<1x16x16xf32> to vector<1x16xf32>
    %87 = vector.shape_cast %86 : vector<1x16xf32> to vector<1x1x16xf32>
    %cst_26 = arith.constant dense<0.000000e+00> : vector<1x1xf32>
    %88 = vector.multi_reduction <add>, %87, %cst_26 [2] : vector<1x1x16xf32> to vector<1x1xf32>
    %89 = vector.shape_cast %88 : vector<1x1xf32> to vector<1x1x1xf32>
    %90 = arith.addf %34, %89 : vector<1x1x1xf32>
    %c0_27 = arith.constant 0 : index
    %c0_28 = arith.constant 0 : index
    %c0_29 = arith.constant 0 : index
    %91 = vector.load %arg5[%c0_27, %c0_28, %c0_29] : memref<1x8x16xf32, #tpu.memory_space<vmem>>, vector<1x8x16xf32>
    %c0_30 = arith.constant 0 : index
    %c0_31 = arith.constant 0 : index
    %c0_32 = arith.constant 0 : index
    %92 = vector.load %arg6[%c0_30, %c0_31, %c0_32] : memref<1x8x24xf32, #tpu.memory_space<vmem>>, vector<1x8x24xf32>
    %cst_33 = arith.constant 0x7F800000 : f32
    %93 = vector.broadcast %cst_33 : f32 to vector<1x1x24xf32>
    %c0_34 = arith.constant 0 : index
    %c0_35 = arith.constant 0 : index
    %c0_36 = arith.constant 0 : index
    %94 = vector.load %arg5[%c0_34, %c0_35, %c0_36] : memref<1x8x16xf32, #tpu.memory_space<vmem>>, vector<1x8x16xf32>
    %cst_37 = arith.constant dense<0.000000e+00> : vector<1x16x24xf32>
    %95 = tpu.matmul %94, %92, %cst_37 {dimension_numbers = #tpu.dot_dimension_numbers<[1], [1], [2], [2], [0, 0, 0, 2, 1, 2], [0], [0]>} : vector<1x8x16xf32>, vector<1x8x24xf32>, vector<1x16x24xf32> -> vector<1x16x24xf32>
    %cst_38 = arith.constant dense<0x7F800000> : vector<1x24xf32>
    %96 = vector.multi_reduction <minimumf>, %95, %cst_38 [1] : vector<1x16x24xf32> to vector<1x24xf32>
    %97 = vector.shape_cast %96 : vector<1x24xf32> to vector<1x1x24xf32>
    %98 = arith.minimumf %93, %97 : vector<1x1x24xf32>
    %cst_39 = arith.constant dense<0.000000e+00> : vector<1x1xf32>
    %99 = vector.multi_reduction <add>, %98, %cst_39 [2] : vector<1x1x24xf32> to vector<1x1xf32>
    %100 = vector.shape_cast %99 : vector<1x1xf32> to vector<1x1x1xf32>
    %cst_40 = arith.constant 0x7F800000 : f32
    %101 = vector.broadcast %cst_40 : f32 to vector<1x1x16xf32>
    %c0_41 = arith.constant 0 : index
    %c0_42 = arith.constant 0 : index
    %c0_43 = arith.constant 0 : index
    %102 = vector.load %arg6[%c0_41, %c0_42, %c0_43] : memref<1x8x24xf32, #tpu.memory_space<vmem>>, vector<1x8x24xf32>
    %cst_44 = arith.constant dense<0.000000e+00> : vector<1x24x16xf32>
    %103 = tpu.matmul %102, %91, %cst_44 {dimension_numbers = #tpu.dot_dimension_numbers<[1], [1], [2], [2], [0, 0, 0, 2, 1, 2], [0], [0]>} : vector<1x8x24xf32>, vector<1x8x16xf32>, vector<1x24x16xf32> -> vector<1x24x16xf32>
    %cst_45 = arith.constant dense<0x7F800000> : vector<1x16xf32>
    %104 = vector.multi_reduction <minimumf>, %103, %cst_45 [1] : vector<1x24x16xf32> to vector<1x16xf32>
    %105 = vector.shape_cast %104 : vector<1x16xf32> to vector<1x1x16xf32>
    %106 = arith.minimumf %101, %105 : vector<1x1x16xf32>
    %cst_46 = arith.constant dense<0.000000e+00> : vector<1x1xf32>
    %107 = vector.multi_reduction <add>, %106, %cst_46 [2] : vector<1x1x16xf32> to vector<1x1xf32>
    %108 = vector.shape_cast %107 : vector<1x1xf32> to vector<1x1x1xf32>
    %109 = tpu.iota {dimensions = array<i32: 2>} : vector<1x1x128xi32>
    %c0_i32_47 = arith.constant 0 : i32
    %110 = vector.broadcast %c0_i32_47 : i32 to vector<1x1x128xi32>
    %111 = arith.cmpi eq, %109, %110 : vector<1x1x128xi32>
    %c1_i32_48 = arith.constant 1 : i32
    %112 = vector.broadcast %c1_i32_48 : i32 to vector<1x1x128xi32>
    %113 = arith.cmpi eq, %109, %112 : vector<1x1x128xi32>
    %c2_i32 = arith.constant 2 : i32
    %114 = vector.broadcast %c2_i32 : i32 to vector<1x1x128xi32>
    %115 = arith.cmpi eq, %109, %114 : vector<1x1x128xi32>
    %cst_49 = arith.constant 0.000000e+00 : f32
    %116 = vector.shape_cast %108 : vector<1x1x1xf32> to vector<1x1x1xf32>
    %117 = vector.broadcast %116 : vector<1x1x1xf32> to vector<1x1x128xf32>
    %118 = vector.broadcast %cst_49 : f32 to vector<1x1x128xf32>
    %119 = arith.select %115, %117, %118 : vector<1x1x128xi1>, vector<1x1x128xf32>
    %120 = vector.shape_cast %100 : vector<1x1x1xf32> to vector<1x1x1xf32>
    %121 = vector.broadcast %120 : vector<1x1x1xf32> to vector<1x1x128xf32>
    %122 = arith.select %113, %121, %119 : vector<1x1x128xi1>, vector<1x1x128xf32>
    %123 = vector.shape_cast %90 : vector<1x1x1xf32> to vector<1x1x1xf32>
    %124 = vector.broadcast %123 : vector<1x1x1xf32> to vector<1x1x128xf32>
    %125 = arith.select %111, %124, %122 : vector<1x1x128xi1>, vector<1x1x128xf32>
    %c0_50 = arith.constant 0 : index
    %c0_51 = arith.constant 0 : index
    %c0_52 = arith.constant 0 : index
    %126 = vector.load %arg7[%c0_50, %c0_51, %c0_52] : memref<1x1x128xf32, #tpu.memory_space<vmem>>, vector<1x1x128xf32>
    tpu.vector_store %arg7[%c0_50, %c0_51, %c0_52], %125 {strides = array<i32>} : memref<1x1x128xf32, #tpu.memory_space<vmem>>, vector<1x1x128xf32>,
    return
  }
  func.func @transform_0(%arg0: i32, %arg1: memref<2xi32, #tpu.memory_space<smem>>) -> (i32, i32, i32) {
    %c0_i32 = arith.constant 0 : i32
    %c0_i32_0 = arith.constant 0 : i32
    %c0_i32_1 = arith.constant 0 : i32
    return %arg0, %c0_i32, %c0_i32_0 : i32, i32, i32
  }
  func.func @transform_1(%arg0: i32, %arg1: memref<2xi32, #tpu.memory_space<smem>>) -> (i32, i32, i32) {
    %c0_i32 = arith.constant 0 : i32
    %c0_i32_0 = arith.constant 0 : i32
    %c0_i32_1 = arith.constant 0 : i32
    return %arg0, %c0_i32, %c0_i32_0 : i32, i32, i32
  }
  func.func @transform_2(%arg0: i32, %arg1: memref<2xi32, #tpu.memory_space<smem>>) -> (i32, i32, i32) {
    %c0_i32 = arith.constant 0 : i32
    %c0_i32_0 = arith.constant 0 : i32
    %c0_i32_1 = arith.constant 0 : i32
    return %arg0, %c0_i32, %c0_i32_0 : i32, i32, i32
  }
  func.func @transform_3(%arg0: i32, %arg1: memref<2xi32, #tpu.memory_space<smem>>) -> (i32, i32, i32) {
    %c0_i32 = arith.constant 0 : i32
    %c0_i32_0 = arith.constant 0 : i32
    %c0_i32_1 = arith.constant 0 : i32
    return %arg0, %c0_i32, %c0_i32_0 : i32, i32, i32
  }
  func.func @transform_4(%arg0: i32, %arg1: memref<2xi32, #tpu.memory_space<smem>>) -> (i32, i32, i32) {
    %c0_i32 = arith.constant 0 : i32
    %c0_i32_0 = arith.constant 0 : i32
    %c0_i32_1 = arith.constant 0 : i32
    return %arg0, %c0_i32, %c0_i32_0 : i32, i32, i32
  }
  func.func @transform_5(%arg0: i32, %arg1: memref<2xi32, #tpu.memory_space<smem>>) -> (i32, i32, i32) {
    %c0_i32 = arith.constant 0 : i32
    %c0_i32_0 = arith.constant 0 : i32
    %c0_i32_1 = arith.constant 0 : i32
    return %arg0, %c0_i32, %c0_i32_0 : i32, i32, i32
  }
}

</mosaic_0001>

<llo_original>
// kernel: _lambda_.1
$region0: #{_lambda_.1}
  #allocation0 [shape = 'u32[]', space=smem, size = 0x4, offset = 0x4, fixed_abs, tag = 'smem constant byte address 0x4 - core index']
  #allocation1 [shape = 'u32[72,128]{1,0:T(1,128)}', space=vmem, size = 0x9000, scoped, tag = 'internal scratch']
  #allocation2 [shape = 's32[1]{0}', space=sflag, size = 0x4, scoped, tag = 'scoped memory for _lambda_.1']
  #allocation3 [shape = 'u8[512]{0}', space=smem, size = 0x200, scoped, tag = 'prefetched SMEM operand 0']
  %s0 = inlined_call_operand.vmem [shape: s32[2], index: 0, kind: input, shape index: {}]
  %s1 = inlined_call_operand.vmem [shape: f32[2,32,16], index: 1, kind: input, shape index: {}]
  %s2 = inlined_call_operand.vmem [shape: f32[2,16,1], index: 2, kind: input, shape index: {}]
  %s3 = inlined_call_operand.vmem [shape: f32[2,1,16], index: 3, kind: input, shape index: {}]
  %s4 = inlined_call_operand.vmem [shape: f32[2,8,16], index: 4, kind: input, shape index: {}]
  %s5 = inlined_call_operand.vmem [shape: f32[2,8,24], index: 5, kind: input, shape index: {}]
  %s6 = inlined_call_operand.vmem [shape: f32[2,1,128], index: 6, kind: output, shape index: {}]
  %s7 = sld [smem:[#allocation0]]
  $region53: #{_lambda_.1} parent=0
    _
  %s9 = ssub.s32 1, %s7
  %s10 = scalar_select 0, %s9, %s7
  %s12 = sshll.u32 %s0, 4
  %s13 = int_to_ptr.vmem [resolvable:$true] %s12
  %15 = dma.vmem_to_smem %s13, 16, [#allocation3], [#allocation2]
  %17 = dma.done [#allocation2], 16
  %18 = sfence
  loop: start=0, step=1, limit=4
  $region2: #{_lambda_.1} parent=0 // loop_pre_header
    _
  $region3: #{_lambda_.1} parent=0 // loop_header
    %s20 = sphi 0, %s24
    %p21 = scmp.ge.s32.totalorder %s20, 4
    %s30 = sphi 0, %s32
    %s33 = sphi 0, %s30
    %s34 = sphi 0, %s33
    %s50 = sphi 0, %s34
    %s56 = sphi 0, %s58
    %s59 = sphi 0, %s56
    %s60 = sphi 0, %s59
    %s76 = sphi 0, %s60
    %s82 = sphi 0, %s84
    %s85 = sphi 0, %s82
    %s86 = sphi 0, %s85
    %s102 = sphi 0, %s86
    %s108 = sphi 0, %s110
    %s111 = sphi 0, %s108
    %s112 = sphi 0, %s111
    %s128 = sphi 0, %s112
    %s134 = sphi 0, %s136
    %s137 = sphi 0, %s134
    %s138 = sphi 0, %s137
    %s154 = sphi 0, %s138
    %s160 = sphi 0, %s162
    %s163 = sphi 0, %s160
    %s164 = sphi 0, %s163
    %s180 = sphi 0, %s164
  $region4: #{_lambda_.1} parent=0 // loop_header_branch
    %23 = sbr.rel (%p21) target = $region8
  $region5: #{_lambda_.1} parent=0 // loop_body
    %s25 = ssub.s32 %s20, 1
    %s26 = ssub.s32 %s20, 2
    %s27 = sadd.s32 %s20, 1
    %s28 = ssub.s32 %s20, %s27
    %p29 = scmp.eq.s32.totalorder %s28, 0
    %s31 = sadd.s32 %s30, 1
    %s32 = scalar_select %p29, %s30, %s31
    %p35 = pneg %p29
    %p36 = scmp.eq.s32.totalorder %s20, 1
    %p37 = por %p35, %p36
    %p38 = scmp.ne.s32.totalorder %s30, %s33
    %p39 = scmp.eq.s32.totalorder %s20, 0
    %p40 = por %p38, %p39
    %p41 = scmp.ne.s32.totalorder %s30, %s33
    %p42 = scmp.eq.s32.totalorder %s25, 1
    %p43 = por %p41, %p42
    %p44 = scmp.ne.s32.totalorder %s33, %s34
    %p45 = scmp.eq.s32.totalorder %s25, 0
    %p46 = por %p44, %p45
    %p47 = scmp.ne.s32.totalorder %s33, %s34
    %p48 = scmp.eq.s32.totalorder %s26, 1
    %p49 = por %p47, %p48
    %p51 = scmp.ne.s32.totalorder %s34, %s50
    %p52 = scmp.eq.s32.totalorder %s26, 0
    %p53 = por %p51, %p52
    %s54 = ssub.s32 %s20, %s27
    %p55 = scmp.eq.s32.totalorder %s54, 0
    %s57 = sadd.s32 %s56, 1
    %s58 = scalar_select %p55, %s56, %s57
    %p61 = pneg %p55
    %p62 = scmp.eq.s32.totalorder %s20, 1
    %p63 = por %p61, %p62
    %p64 = scmp.ne.s32.totalorder %s56, %s59
    %p65 = scmp.eq.s32.totalorder %s20, 0
    %p66 = por %p64, %p65
    %p67 = scmp.ne.s32.totalorder %s56, %s59
    %p68 = scmp.eq.s32.totalorder %s25, 1
    %p69 = por %p67, %p68
    %p70 = scmp.ne.s32.totalorder %s59, %s60
    %p71 = scmp.eq.s32.totalorder %s25, 0
    %p72 = por %p70, %p71
    %p73 = scmp.ne.s32.totalorder %s59, %s60
    %p74 = scmp.eq.s32.totalorder %s26, 1
    %p75 = por %p73, %p74
    %p77 = scmp.ne.s32.totalorder %s60, %s76
    %p78 = scmp.eq.s32.totalorder %s26, 0
    %p79 = por %p77, %p78
    %s80 = ssub.s32 %s20, %s27
    %p81 = scmp.eq.s32.totalorder %s80, 0
    %s83 = sadd.s32 %s82, 1
    %s84 = scalar_select %p81, %s82, %s83
    %p87 = pneg %p81
    %p88 = scmp.eq.s32.totalorder %s20, 1
    %p89 = por %p87, %p88
    %p90 = scmp.ne.s32.totalorder %s82, %s85
    %p91 = scmp.eq.s32.totalorder %s20, 0
    %p92 = por %p90, %p91
    %p93 = scmp.ne.s32.totalorder %s82, %s85
    %p94 = scmp.eq.s32.totalorder %s25, 1
    %p95 = por %p93, %p94
    %p96 = scmp.ne.s32.totalorder %s85, %s86
    %p97 = scmp.eq.s32.totalorder %s25, 0
    %p98 = por %p96, %p97
    %p99 = scmp.ne.s32.totalorder %s85, %s86
    %p100 = scmp.eq.s32.totalorder %s26, 1
    %p101 = por %p99, %p100
    %p103 = scmp.ne.s32.totalorder %s86, %s102
    %p104 = scmp.eq.s32.totalorder %s26, 0
    %p105 = por %p103, %p104
    %s106 = ssub.s32 %s20, %s27
    %p107 = scmp.eq.s32.totalorder %s106, 0
    %s109 = sadd.s32 %s108, 1
    %s110 = scalar_select %p107, %s108, %s109
    %p113 = pneg %p107
    %p114 = scmp.eq.s32.totalorder %s20, 1
    %p115 = por %p113, %p114
    %p116 = scmp.ne.s32.totalorder %s108, %s111
    %p117 = scmp.eq.s32.totalorder %s20, 0
    %p118 = por %p116, %p117
    %p119 = scmp.ne.s32.totalorder %s108, %s111
    %p120 = scmp.eq.s32.totalorder %s25, 1
    %p121 = por %p119, %p120
    %p122 = scmp.ne.s32.totalorder %s111, %s112
    %p123 = scmp.eq.s32.totalorder %s25, 0
    %p124 = por %p122, %p123
    %p125 = scmp.ne.s32.totalorder %s111, %s112
    %p126 = scmp.eq.s32.totalorder %s26, 1
    %p127 = por %p125, %p126
    %p129 = scmp.ne.s32.totalorder %s112, %s128
    %p130 = scmp.eq.s32.totalorder %s26, 0
    %p131 = por %p129, %p130
    %s132 = ssub.s32 %s20, %s27
    %p133 = scmp.eq.s32.totalorder %s132, 0
    %s135 = sadd.s32 %s134, 1
    %s136 = scalar_select %p133, %s134, %s135
    %p139 = pneg %p133
    %p140 = scmp.eq.s32.totalorder %s20, 1
    %p141 = por %p139, %p140
    %p142 = scmp.ne.s32.totalorder %s134, %s137
    %p143 = scmp.eq.s32.totalorder %s20, 0
    %p144 = por %p142, %p143
    %p145 = scmp.ne.s32.totalorder %s134, %s137
    %p146 = scmp.eq.s32.totalorder %s25, 1
    %p147 = por %p145, %p146
    %p148 = scmp.ne.s32.totalorder %s137, %s138
    %p149 = scmp.eq.s32.totalorder %s25, 0
    %p150 = por %p148, %p149
    %p151 = scmp.ne.s32.totalorder %s137, %s138
    %p152 = scmp.eq.s32.totalorder %s26, 1
    %p153 = por %p151, %p152
    %p155 = scmp.ne.s32.totalorder %s138, %s154
    %p156 = scmp.eq.s32.totalorder %s26, 0
    %p157 = por %p155, %p156
    %s158 = ssub.s32 %s20, %s27
    %p159 = scmp.eq.s32.totalorder %s158, 0
    %s161 = sadd.s32 %s160, 1
    %s162 = scalar_select %p159, %s160, %s161
    %p165 = pneg %p159
    %p166 = scmp.eq.s32.totalorder %s20, 1
    %p167 = por %p165, %p166
    %p168 = scmp.ne.s32.totalorder %s160, %s163
    %p169 = scmp.eq.s32.totalorder %s20, 0
    %p170 = por %p168, %p169
    %p171 = scmp.ne.s32.totalorder %s160, %s163
    %p172 = scmp.eq.s32.totalorder %s25, 1
    %p173 = por %p171, %p172
    %p174 = scmp.ne.s32.totalorder %s163, %s164
    %p175 = scmp.eq.s32.totalorder %s25, 0
    %p176 = por %p174, %p175
    %p177 = scmp.ne.s32.totalorder %s163, %s164
    %p178 = scmp.eq.s32.totalorder %s26, 1
    %p179 = por %p177, %p178
    %p181 = scmp.ne.s32.totalorder %s164, %s180
    %p182 = scmp.eq.s32.totalorder %s26, 0
    %p183 = por %p181, %p182
    %p184 = scmp.le.s32.totalorder 1, %s20
    %p185 = scmp.lt.s32.totalorder %s20, 3
    %p186 = pnand %p184, %p185
    %p187 = pneg %p186
    // Predicated region
    $region9: #{_lambda_.1} parent=5 // pred_check
      _
    $region10: #{_lambda_.1} parent=5 // pred_check_branch
      %189 = sbr.rel (%p186) target = $region12
    $region11: #{_lambda_.1} parent=5 // pred_region
      %s190 = ssub.s32 %s20, 1
    $region12: #{_lambda_.1} parent=5 // pred_fallthru
      _
    %p191 = scmp.lt.s32.totalorder %s20, 2
    // Predicated region
    $region13: #{_lambda_.1} parent=5 // pred_check
      %p192 = pneg %p191
    $region14: #{_lambda_.1} parent=5 // pred_check_branch
      %194 = sbr.rel (%p192) target = $region16
    $region15: #{_lambda_.1} parent=5 // pred_region
      // Predicated region
      $region17: #{_lambda_.1} parent=15 // pred_check
        %p195 = pneg %p40
      $region18: #{_lambda_.1} parent=15 // pred_check_branch
        %197 = sbr.rel (%p195) target = $region20
      $region19: #{_lambda_.1} parent=15 // pred_region
        %p198 = scmp.lt.s32.totalorder %s20, 1
        %s199 = scalar_select %p198, %s20, 1
        %s200 = smul.addr %s199, 4
        %s201 = smul.addr %s200, 8
        %s202 = scalar_lea.vmem %s1, %s201
      $region20: #{_lambda_.1} parent=15 // pred_fallthru
        _
      // Predicated region
      $region21: #{_lambda_.1} parent=15 // pred_check
        %p203 = pneg %p66
      $region22: #{_lambda_.1} parent=15 // pred_check_branch
        %205 = sbr.rel (%p203) target = $region24
      $region23: #{_lambda_.1} parent=15 // pred_region
        %p206 = scmp.lt.s32.totalorder %s20, 1
        %s207 = scalar_select %p206, %s20, 1
        %s208 = smul.addr %s207, 2
        %s209 = smul.addr %s208, 8
        %s210 = scalar_lea.vmem %s2, %s209
      $region24: #{_lambda_.1} parent=15 // pred_fallthru
        _
      // Predicated region
      $region25: #{_lambda_.1} parent=15 // pred_check
        %p211 = pneg %p92
      $region26: #{_lambda_.1} parent=15 // pred_check_branch
        %213 = sbr.rel (%p211) target = $region28
      $region27: #{_lambda_.1} parent=15 // pred_region
        %p214 = scmp.lt.s32.totalorder %s20, 1
        %s215 = scalar_select %p214, %s20, 1
        %s216 = scalar_lea.vmem %s3, %s215
      $region28: #{_lambda_.1} parent=15 // pred_fallthru
        _
      // Predicated region
      $region29: #{_lambda_.1} parent=15 // pred_check
        %p217 = pneg %p118
      $region30: #{_lambda_.1} parent=15 // pred_check_branch
        %219 = sbr.rel (%p217) target = $region32
      $region31: #{_lambda_.1} parent=15 // pred_region
        %p220 = scmp.lt.s32.totalorder %s20, 1
        %s221 = scalar_select %p220, %s20, 1
        %s222 = smul.addr %s221, 8
        %s223 = scalar_lea.vmem %s4, %s222
      $region32: #{_lambda_.1} parent=15 // pred_fallthru
        _
      // Predicated region
      $region33: #{_lambda_.1} parent=15 // pred_check
        %p224 = pneg %p144
      $region34: #{_lambda_.1} parent=15 // pred_check_branch
        %226 = sbr.rel (%p224) target = $region36
      $region35: #{_lambda_.1} parent=15 // pred_region
        %p227 = scmp.lt.s32.totalorder %s20, 1
        %s228 = scalar_select %p227, %s20, 1
        %s229 = smul.addr %s228, 8
        %s230 = scalar_lea.vmem %s5, %s229
      $region36: #{_lambda_.1} parent=15 // pred_fallthru
        _
    $region16: #{_lambda_.1} parent=5 // pred_fallthru
      _
    %p231 = scmp.le.s32.totalorder 1, %s20
    %p232 = scmp.lt.s32.totalorder %s20, 3
    %p233 = pnand %p231, %p232
    %p234 = pneg %p233
    // Predicated region
    $region37: #{_lambda_.1} parent=5 // pred_check
      _
    $region38: #{_lambda_.1} parent=5 // pred_check_branch
      %236 = sbr.rel (%p233) target = $region40
    $region39: #{_lambda_.1} parent=5 // pred_region
      %s237 = ssub.s32 %s20, 1
      %p238 = scmp.lt.s32.totalorder %s25, 1
      %s239 = scalar_select %p238, %s25, 1
      %s240 = smul.addr %s239, 4
      %s241 = smul.addr %s240, 8
      %s242 = scalar_lea.vmem %s1, %s241
      %p243 = pneg %p46
      %p244 = pneg %p43
      %p245 = scmp.lt.s32.totalorder %s25, 1
      %s246 = scalar_select %p245, %s25, 1
      %s247 = smul.addr %s246, 2
      %s248 = smul.addr %s247, 8
      %s249 = scalar_lea.vmem %s2, %s248
      %p250 = pneg %p72
      %p251 = pneg %p69
      %p252 = scmp.lt.s32.totalorder %s25, 1
      %s253 = scalar_select %p252, %s25, 1
      %s254 = scalar_lea.vmem %s3, %s253
      %p255 = pneg %p98
      %p256 = pneg %p95
      %p257 = scmp.lt.s32.totalorder %s25, 1
      %s258 = scalar_select %p257, %s25, 1
      %s259 = smul.addr %s258, 8
      %s260 = scalar_lea.vmem %s4, %s259
      %p261 = pneg %p124
      %p262 = pneg %p121
      %p263 = scmp.lt.s32.totalorder %s25, 1
      %s264 = scalar_select %p263, %s25, 1
      %s265 = smul.addr %s264, 8
      %s266 = scalar_lea.vmem %s5, %s265
      %p267 = pneg %p150
      %p268 = pneg %p147
      %p269 = pneg %p176
      %p270 = pneg %p173
      %p271 = scmp.lt.s32.totalorder %s25, 1
      %s272 = scalar_select %p271, %s25, 1
      %s273 = scalar_lea.vmem %s6, %s272
      %p274 = scmp.lt.s32.totalorder %s25, 1
      %s275 = scalar_select %p274, %s25, 1
      %s276 = smul.addr %s275, 4
      %s277 = smul.addr %s276, 8
      %s278 = scalar_lea.vmem %s1, %s277
      %p279 = scmp.lt.s32.totalorder %s25, 1
      %s280 = scalar_select %p279, %s25, 1
      %s281 = smul.addr %s280, 2
      %s282 = smul.addr %s281, 8
      %s283 = scalar_lea.vmem %s2, %s282
      %p284 = scmp.lt.s32.totalorder %s25, 1
      %s285 = scalar_select %p284, %s25, 1
      %s286 = scalar_lea.vmem %s3, %s285
      %p287 = scmp.lt.s32.totalorder %s25, 1
      %s288 = scalar_select %p287, %s25, 1
      %s289 = smul.addr %s288, 8
      %s290 = scalar_lea.vmem %s4, %s289
      %p291 = scmp.lt.s32.totalorder %s25, 1
      %s292 = scalar_select %p291, %s25, 1
      %s293 = smul.addr %s292, 8
      %s294 = scalar_lea.vmem %s5, %s293
      %p295 = scmp.lt.s32.totalorder %s25, 1
      %s296 = scalar_select %p295, %s25, 1
      %s297 = scalar_lea.vmem %s6, %s296
      %s299 = sld [smem:[#allocation3]]
      %s300 = sld [smem:[#allocation3 + $0x1]]
      %v301 = vstv %s300
      %v302 = vld [vmem:[%s278] sm:$0xff]
      %v303 = vld [vmem:[%s278 + $0x8] sm:$0xff]
      %v304 = vld [vmem:[%s278 + $0x10] sm:$0xff]
      %v305 = vld [vmem:[%s278 + $0x18] sm:$0xff]
      %v306 = vmul.f32 %v302, %v302
      %v307 = vmul.f32 %v303, %v303
      %v308 = vmul.f32 %v304, %v304
      %v309 = vmul.f32 %v305, %v305
      %vm310 = vcmask 130048
      %v311 = vsel %vm310, %v306, 0.0
      %v312 = vsel %vm310, %v307, 0.0
      %v313 = vadd.f32 %v311, %v312
      %v314 = vsel %vm310, %v308, 0.0
      %v315 = vadd.f32 %v313, %v314
      %v316 = vsel %vm310, %v309, 0.0
      %v317 = vadd.f32 %v315, %v316
      %v318 = vrot.slane %v317, 4
      %v319 = vadd.f32 %v317, %v318
      %v320 = vrot.slane %v319, 2
      %v321 = vadd.f32 %v319, %v320
      %v322 = vrot.slane %v321, 1
      %v323 = vadd.f32 %v321, %v322
      %v324 = vmax.f32 %v323, 1e-24
      %v325 = vrsqrt.pop %v324
      %v326 = vmul.f32 %v325, %v324
      %v327 = vmul.f32 %v326, %v325
      %v328 = vmul.f32 0.5, %v327
      %v329 = vsub.f32 1.5, %v328
      %v330 = vmul.f32 %v325, %v329
      %vm331 = vweird.f32 %v324
      %vm332 = vweird.f32 %v325
      %vm333 = vmor %vm331, %vm332
      %v334 = vsel %vm333, %v325, %v330
      %v335 = vmul.f32 %v302, %v334
      %v336 = vmul.f32 %v303, %v334
      %v337 = vmul.f32 %v304, %v334
      %v338 = vmul.f32 %v305, %v334
      %v339 = vpack.c.bf16 %v335, %v335
      %v340 = vpack.c.bf16 %v336, %v336
      %v341 = vpack.c.bf16 %v337, %v337
      %v342 = vpack.c.bf16 %v338, %v338
      %v343 = vld [vmem:[%s286] sm:$0x1]
      %v344 = vstv %s25
      %v345 = vmul.u32 %v344, 2654435761
      %v346 = vadd.s32 %v301, %v345
      %v347 = vlaneseq
      %v348 = vand.u32 %v347, 127
      %v349 = vmul.u32 %v348, 2246822519
      %v350 = vshrl.u32 %v349, 13
      %v351 = vxor.u32 %v349, %v350
      %v352 = vmul.u32 %v351, 3266489917
      %v357 = vunpack.c.l.b16 %v339
      %v358 = vunpack.c.l.b16 %v340
      %v359 = vunpack.c.l.b16 %v341
      %v360 = vunpack.c.l.b16 %v342
      %v361 = vpack.c.b16 %v358, %v357
      %v362 = vpack.c.b16 %v360, %v359
      %365 = vxpose.xlu0.c.b16.start [1/8] %v361, 128
      %366 = vxpose.xlu0.c.b16.cont [2/8] %v362, 128
      %367 = vxpose.xlu0.c.b16.cont [3/8] 0, 128
      %368 = vxpose.xlu0.c.b16.cont [4/8] 0, 128
      %369 = vxpose.xlu0.c.b16.cont [5/8] 0, 128
      %370 = vxpose.xlu0.c.b16.cont [6/8] 0, 128
      %371 = vxpose.xlu0.c.b16.cont [7/8] 0, 128
      %372 = vxpose.xlu0.c.b16.end [8/8] 0, 128
      %v373 = vpop.trf.xlu0
      %v374 = vpop.trf.xlu0
      %v375 = vpop.trf.xlu0
      %v376 = vpop.trf.xlu0
      %v377 = vpop.trf.xlu0
      %v378 = vpop.trf.xlu0
      %v379 = vpop.trf.xlu0
      %v380 = vpop.trf.xlu0
      %vm381 = vcmask 261120
      %v383 = vsel %vm381, %v373, 0
      %385 = vmatpush.bf16.msra.mxu0 0
      %386 = vmatpush.bf16.msra.mxu0 0
      %387 = vmatpush.bf16.msra.mxu0 0
      %388 = vmatpush.bf16.msra.mxu0 0
      %389 = vmatpush.bf16.msra.mxu0 0
      %390 = vmatpush.bf16.msra.mxu0 0
      %391 = vmatpush.bf16.msra.mxu0 %v362
      %392 = vmatpush.bf16.msra.mxu0 %v361
      %393 = vmatmul.bf16.gmra.mxu0 %v383
      %v394 = vpop.f32.mrf.mxu0
      %v395 = vadd.f32 0.0, %v394
      %v396 = vpop.f32.mrf.mxu0
      %v397 = vadd.f32 0.0, %v396
      %398 = vdwg.mxu0
      %v399 = vld [vmem:[%s283] sm:$0xff]
      %v400 = vld [vmem:[%s283 + $0x8] sm:$0xff]
      %402 = vset.pattern.permute.xlu0 0
      %403 = vperm.xlu0 %402, %v399
      %v404 = vpop.permute.xlu0 %403
      %407 = vset.pattern.permute.xlu0 0
      %408 = vperm.xlu0 %407, %v400
      %v409 = vpop.permute.xlu0 %408
      %v412 = vperm.slane %v343, 0
      %vm414 = vcmp.eq.f32.partialorder %v404, %v412
      %vm415 = vcmp.eq.f32.partialorder %v409, %v412
      %v416 = vlaneseq
      %v417 = vshrl.u32 %v416, 7
      %v418 = vadd.s32 %v417, 8
      %vm419 = vcmp.ne.s32.totalorder %v417, %v348
      %vm420 = vcmp.ne.s32.totalorder %v418, %v348
      %v421 = vmul.u32 %v417, 2654435761
      %v422 = vmul.u32 %v418, 2654435761
      %v423 = vadd.s32 %v346, %v421
      %v424 = vadd.s32 %v346, %v422
      %v425 = vshrl.u32 %v423, 16
      %v426 = vshrl.u32 %v424, 16
      %v427 = vxor.u32 %v423, %v425
      %v428 = vxor.u32 %v424, %v426
      %v429 = vmul.u32 %v427, 2146121005
      %v430 = vmul.u32 %v428, 2146121005
      %v431 = vshrl.u32 %v429, 15
      %v432 = vshrl.u32 %v430, 15
      %v433 = vxor.u32 %v429, %v431
      %v434 = vxor.u32 %v430, %v432
      %v435 = vxor.u32 %v433, %v352
      %v436 = vxor.u32 %v434, %v352
      %v437 = vmul.u32 %v435, 2221713035
      %v438 = vmul.u32 %v436, 2221713035
      %v439 = vstv %s299
      %v440 = vadd.s32 %v437, 2147483648
      %v441 = vadd.s32 %v439, 2147483648
      %vm442 = vcmp.gt.s32.totalorder %v440, %v441
      %v443 = vadd.s32 %v438, 2147483648
      %v444 = vadd.s32 %v439, 2147483648
      %vm445 = vcmp.gt.s32.totalorder %v443, %v444
      %v446 = vsub.f32 %v395, 0.5
      %v447 = vsub.f32 %v397, 0.5
      %v448 = vmax.f32 %v446, 0.0
      %v449 = vmax.f32 %v447, 0.0
      %v450 = vsub.f32 1.0, %v395
      %v451 = vsub.f32 1.0, %v397
      %v452 = vsel %vm442, %v448, 0.0
      %v453 = vsel %vm445, %v449, 0.0
      %v454 = vsel %vm414, %v450, %v452
      %v455 = vsel %vm415, %v451, %v453
      %v456 = vsel %vm419, %v454, 0.0
      %v457 = vsel %vm420, %v455, 0.0
      %v458 = vsel %vm310, %v456, 0.0
      %v459 = vsel %vm310, %v457, 0.0
      %v460 = vadd.f32 %v458, %v459
      %v461 = vrot.slane %v460, 4
      %v462 = vadd.f32 %v460, %v461
      %v463 = vrot.slane %v462, 2
      %v464 = vadd.f32 %v462, %v463
      %v465 = vrot.slane %v464, 1
      %v466 = vadd.f32 %v464, %v465
      %v467 = vsel %vm310, %v466, 0.0
      %468 = vadd.xlane.f32.xlu0 %v467
      %v469 = vpop.xlane.xlu0 %468
      %v470 = vadd.f32 %v469, 0.0
      %v471 = vld [vmem:[%s290] sm:$0xff]
      %v472 = vld [vmem:[%s294] sm:$0xff]
      %473 = vxpose.xlu0.b32.start [1/16] %v471, 128
      %474 = vxpose.xlu0.b32.cont [2/16] 0.0, 128
      %475 = vxpose.xlu0.b32.cont [3/16] 0.0, 128
      %476 = vxpose.xlu0.b32.cont [4/16] 0.0, 128
      %477 = vxpose.xlu0.b32.cont [5/16] 0.0, 128
      %478 = vxpose.xlu0.b32.cont [6/16] 0.0, 128
      %479 = vxpose.xlu0.b32.cont [7/16] 0.0, 128
      %480 = vxpose.xlu0.b32.cont [8/16] 0.0, 128
      %481 = vxpose.xlu0.b32.cont [9/16] 0.0, 128
      %482 = vxpose.xlu0.b32.cont [10/16] 0.0, 128
      %483 = vxpose.xlu0.b32.cont [11/16] 0.0, 128
      %484 = vxpose.xlu0.b32.cont [12/16] 0.0, 128
      %485 = vxpose.xlu0.b32.cont [13/16] 0.0, 128
      %486 = vxpose.xlu0.b32.cont [14/16] 0.0, 128
      %487 = vxpose.xlu0.b32.cont [15/16] 0.0, 128
      %488 = vxpose.xlu0.b32.end [16/16] 0.0, 128
      %v489 = vpop.trf.xlu0
      %v490 = vpop.trf.xlu0
      %v491 = vpop.trf.xlu0
      %v492 = vpop.trf.xlu0
      %v493 = vpop.trf.xlu0
      %v494 = vpop.trf.xlu0
      %v495 = vpop.trf.xlu0
      %v496 = vpop.trf.xlu0
      %v497 = vpop.trf.xlu0
      %v498 = vpop.trf.xlu0
      %v499 = vpop.trf.xlu0
      %v500 = vpop.trf.xlu0
      %v501 = vpop.trf.xlu0
      %v502 = vpop.trf.xlu0
      %v503 = vpop.trf.xlu0
      %v504 = vpop.trf.xlu0
      %vm505 = vcmask 64512
      %v507 = vsel %vm505, %v489, 0
      %v510 = vsel %vm505, %v490, 0
      %512 = vmatpush.msra.mxu0 0.0
      %513 = vmatpush.msra.mxu0 0.0
      %514 = vmatpush.msra.mxu0 0.0
      %515 = vmatpush.msra.mxu0 0.0
      %516 = vmatpush.msra.mxu0 0.0
      %517 = vmatpush.msra.mxu0 0.0
      %518 = vmatpush.msra.mxu0 0.0
      %519 = vmatpush.msra.mxu0 0.0
      %520 = vmatpush.msra.mxu0 0.0
      %521 = vmatpush.msra.mxu0 0.0
      %522 = vmatpush.msra.mxu0 0.0
      %523 = vmatpush.msra.mxu0 0.0
      %524 = vmatpush.msra.mxu0 0.0
      %525 = vmatpush.msra.mxu0 0.0
      %526 = vmatpush.msra.mxu0 0.0
      %527 = vmatpush.msra.mxu0 %v472
      %528 = vmatmul.f32.gmra.mxu0 %v507
      %v529 = vpop.f32.mrf.mxu0
      %v530 = vadd.f32 0.0, %v529
      %531 = vmatmul.f32.gmra.mxu0 %v510
      %v532 = vpop.f32.mrf.mxu0
      %v533 = vadd.f32 0.0, %v532
      %534 = vdwg.mxu0
      %vm535 = vcmask 195584
      %v536 = vsel %vm535, %v530, inf
      %v537 = vsel %vm535, %v533, inf
      %v538 = vmin.f32 %v536, %v537
      %v539 = vrot.slane %v538, 4
      %v540 = vmin.f32 %v538, %v539
      %v541 = vrot.slane %v540, 2
      %v542 = vmin.f32 %v540, %v541
      %v543 = vrot.slane %v542, 1
      %v544 = vmin.f32 %v542, %v543
      %v545 = vsel %vm535, %v544, 0.0
      %546 = vadd.xlane.f32.xlu0 %v545
      %v547 = vpop.xlane.xlu0 %546
      %548 = vxpose.xlu0.b32.start [1/16] %v472, 128
      %549 = vxpose.xlu0.b32.cont [2/16] 0.0, 128
      %550 = vxpose.xlu0.b32.cont [3/16] 0.0, 128
      %551 = vxpose.xlu0.b32.cont [4/16] 0.0, 128
      %552 = vxpose.xlu0.b32.cont [5/16] 0.0, 128
      %553 = vxpose.xlu0.b32.cont [6/16] 0.0, 128
      %554 = vxpose.xlu0.b32.cont [7/16] 0.0, 128
      %555 = vxpose.xlu0.b32.cont [8/16] 0.0, 128
      %556 = vxpose.xlu0.b32.cont [9/16] 0.0, 128
      %557 = vxpose.xlu0.b32.cont [10/16] 0.0, 128
      %558 = vxpose.xlu0.b32.cont [11/16] 0.0, 128
      %559 = vxpose.xlu0.b32.cont [12/16] 0.0, 128
      %560 = vxpose.xlu0.b32.cont [13/16] 0.0, 128
      %561 = vxpose.xlu0.b32.cont [14/16] 0.0, 128
      %562 = vxpose.xlu0.b32.cont [15/16] 0.0, 128
      %563 = vxpose.xlu0.b32.end [16/16] 0.0, 128
      %v564 = vpop.trf.xlu0
      %v565 = vpop.trf.xlu0
      %v566 = vpop.trf.xlu0
      %v567 = vpop.trf.xlu0
      %v568 = vpop.trf.xlu0
      %v569 = vpop.trf.xlu0
      %v570 = vpop.trf.xlu0
      %v571 = vpop.trf.xlu0
      %v572 = vpop.trf.xlu0
      %v573 = vpop.trf.xlu0
      %v574 = vpop.trf.xlu0
      %v575 = vpop.trf.xlu0
      %v576 = vpop.trf.xlu0
      %v577 = vpop.trf.xlu0
      %v578 = vpop.trf.xlu0
      %v579 = vpop.trf.xlu0
      %v581 = vsel %vm505, %v564, 0
      %v584 = vsel %vm505, %v565, 0
      %v587 = vsel %vm505, %v566, 0
      %589 = vmatpush.msra.mxu0 0.0
      %590 = vmatpush.msra.mxu0 0.0
      %591 = vmatpush.msra.mxu0 0.0
      %592 = vmatpush.msra.mxu0 0.0
      %593 = vmatpush.msra.mxu0 0.0
      %594 = vmatpush.msra.mxu0 0.0
      %595 = vmatpush.msra.mxu0 0.0
      %596 = vmatpush.msra.mxu0 0.0
      %597 = vmatpush.msra.mxu0 0.0
      %598 = vmatpush.msra.mxu0 0.0
      %599 = vmatpush.msra.mxu0 0.0
      %600 = vmatpush.msra.mxu0 0.0
      %601 = vmatpush.msra.mxu0 0.0
      %602 = vmatpush.msra.mxu0 0.0
      %603 = vmatpush.msra.mxu0 0.0
      %604 = vmatpush.msra.mxu0 %v471
      %605 = vmatmul.f32.gmra.mxu0 %v581
      %v606 = vpop.f32.mrf.mxu0
      %v607 = vadd.f32 0.0, %v606
      %608 = vmatmul.f32.gmra.mxu0 %v584
      %v609 = vpop.f32.mrf.mxu0
      %v610 = vadd.f32 0.0, %v609
      %611 = vmatmul.f32.gmra.mxu0 %v587
      %v612 = vpop.f32.mrf.mxu0
      %v613 = vadd.f32 0.0, %v612
      %614 = vdwg.mxu0
      %v615 = vsel %vm310, %v607, inf
      %v616 = vsel %vm310, %v610, inf
      %v617 = vsel %vm310, %v613, inf
      %v618 = vmin.f32 %v615, %v616
      %v619 = vmin.f32 %v618, %v617
      %v620 = vrot.slane %v619, 4
      %v621 = vmin.f32 %v619, %v620
      %v622 = vrot.slane %v621, 2
      %v623 = vmin.f32 %v621, %v622
      %v624 = vrot.slane %v623, 1
      %v625 = vmin.f32 %v623, %v624
      %v626 = vsel %vm310, %v625, 0.0
      %627 = vadd.xlane.f32.xlu0 %v626
      %v628 = vpop.xlane.xlu0 %627
      %vm629 = vcmp.eq.s32.totalorder %v348, 0
      %vm630 = vcmp.eq.s32.totalorder %v348, 1
      %vm631 = vcmp.eq.s32.totalorder %v348, 2
      %v632 = vsel %vm631, %v628, 0.0
      %v633 = vsel %vm630, %v547, %v632
      %v634 = vsel %vm629, %v470, %v633
      %635 = vst [vmem:[%s297] sm:$0x1] %v634
      %p636 = scmp.lt.s32.totalorder %s25, 1
      %s637 = scalar_select %p636, %s25, 1
      %s638 = scalar_lea.vmem %s6, %s637
      // Predicated region
      $region41: #{_lambda_.1} parent=39 // pred_check
        %p639 = pneg %p173
      $region42: #{_lambda_.1} parent=39 // pred_check_branch
        %641 = sbr.rel (%p639) target = $region44
      $region43: #{_lambda_.1} parent=39 // pred_region
        _
      $region44: #{_lambda_.1} parent=39 // pred_fallthru
        _
    $region40: #{_lambda_.1} parent=5 // pred_fallthru
      _
    %p642 = scmp.le.s32.totalorder 2, %s20
    // Predicated region
    $region45: #{_lambda_.1} parent=5 // pred_check
      %p643 = pneg %p642
    $region46: #{_lambda_.1} parent=5 // pred_check_branch
      %645 = sbr.rel (%p643) target = $region48
    $region47: #{_lambda_.1} parent=5 // pred_region
      %s646 = ssub.s32 %s20, 2
      // Predicated region
      $region49: #{_lambda_.1} parent=47 // pred_check
        %p647 = pneg %p179
      $region50: #{_lambda_.1} parent=47 // pred_check_branch
        %649 = sbr.rel (%p647) target = $region52
      $region51: #{_lambda_.1} parent=47 // pred_region
        %p650 = scmp.lt.s32.totalorder %s26, 1
        %s651 = scalar_select %p650, %s26, 1
        %s652 = scalar_lea.vmem %s6, %s651
      $region52: #{_lambda_.1} parent=47 // pred_fallthru
        _
    $region48: #{_lambda_.1} parent=5 // pred_fallthru
      _
  $region6: #{_lambda_.1} parent=0 // loop_footer
    %s24 = sadd.s32 1, %s20
  $region7: #{_lambda_.1} parent=0 // loop_footer_branch
    %19 = sbr.rel target = $region3
  $region8: #{_lambda_.1} parent=0 // loop_exit
    _

</llo_original>
